<compile_context>
chip_gen: v5e
topology: v5e:2x2
jax: 0.10.0
libtpu: 0.0.40
codegen_flags: <defaults>
</compile_context>

<pallas_src>
import functools

import jax
import jax.numpy as jnp
from jax.experimental import pallas as pl
from jax.experimental.pallas import tpu as pltpu


LANE = 128   # TPU lane width
SUBLANE = 8  # TPU sublane width


def _round_up(x, m):
    return (x + m - 1) // m * m


# ---------------------------------------------------------------------------
# Fused kernel: the entire MLP forward for one batch tile.
# ---------------------------------------------------------------------------
def _fc_kernel(x_ref, *refs, num_layers_total, activation_last):
    """refs = (W0, b0, W1, b1, ..., W_{L-1}, b_{L-1}, o_ref)."""
    o_ref = refs[-1]
    wb = refs[:-1]

    s = x_ref[...]                                    # (tm, d0_p)  f32
    for i in range(num_layers_total):
        w = wb[2 * i][...]                            # (d_i_p, d_{i+1}_p)
        b = wb[2 * i + 1][...]                        # (1, d_{i+1}_p)
        a = jnp.tanh(s)                               # tanh BEFORE each Linear
        s = jnp.dot(a, w, preferred_element_type=jnp.float32) + b
    if activation_last:
        s = jnp.tanh(s)
    o_ref[...] = s.astype(o_ref.dtype)                # one lane-dense store


# ---------------------------------------------------------------------------
# Wrapper: padding + pallas_call plumbing.
# ---------------------------------------------------------------------------
def fc_forward(y, params, *, activation_last, tm=SUBLANE):
    """y: (B, input_shape); params: list of (W:(din,dout), b:(dout,))."""
    B, Din = y.shape
    L = len(params)
    Dout = params[-1][0].shape[1]

    # Layer widths, padded to full 128-lane tiles (exact: see header comment).
    dims = [Din] + [w.shape[1] for w, _ in params]
    dims_p = [_round_up(d, LANE) for d in dims]
    Bp = _round_up(B, tm)

    x_p = jnp.zeros((Bp, dims_p[0]), jnp.float32).at[:B, :Din].set(y)

    padded = []
    for i, (w, b) in enumerate(params):
        wp = (jnp.zeros((dims_p[i], dims_p[i + 1]), jnp.float32)
              .at[: w.shape[0], : w.shape[1]].set(w))
        bp = (jnp.zeros((1, dims_p[i + 1]), jnp.float32)
              .at[:, : b.shape[0]].set(b.reshape(1, -1)))
        padded.extend([wp, bp])

    kernel = functools.partial(
        _fc_kernel, num_layers_total=L, activation_last=activation_last)

    # Batch tiles walk the grid; weights/biases use constant index_maps so the
    # same VMEM-resident block is reused every step.
    in_specs = [pl.BlockSpec((tm, dims_p[0]), lambda i: (i, 0))]
    for i in range(L):
        din_p, dout_p = dims_p[i], dims_p[i + 1]
        in_specs.append(pl.BlockSpec((din_p, dout_p), lambda i: (0, 0)))
        in_specs.append(pl.BlockSpec((1, dout_p), lambda i: (0, 0)))

    out_p = pl.pallas_call(
        kernel,
        grid=(Bp // tm,),
        in_specs=in_specs,
        out_specs=pl.BlockSpec((tm, dims_p[-1]), lambda i: (i, 0)),
        out_shape=jax.ShapeDtypeStruct((Bp, dims_p[-1]), jnp.float32),
        compiler_params=pltpu.CompilerParams(
            dimension_semantics=("parallel",)),
    )(x_p, *padded)

    return out_p[:B, :Dout]


# ---------------------------------------------------------------------------
# Deterministic parameter init (PyTorch nn.Linear-like uniform).
# ---------------------------------------------------------------------------
def init_fc_params(key, input_shape, output_shape, num_layers, n=100):
    dims = [(input_shape, n)] + [(n, n)] * num_layers + [(n, output_shape)]
    params = []
    for k, (fi, fo) in zip(jax.random.split(key, len(dims)), dims):
        kw, kb = jax.random.split(k)
        bound = float(fi) ** -0.5
        w = jax.random.uniform(kw, (fi, fo), jnp.float32, -bound, bound)
        b = jax.random.uniform(kb, (fo,), jnp.float32, -bound, bound)
        params.append((w, b))
    return params


# ---------------------------------------------------------------------------
# Pure-JAX reference for correctness checking.
# ---------------------------------------------------------------------------
def _ref_fc(y, params, activation_last):
    s = y
    for w, b in params:
        s = jnp.tanh(s) @ w + b
    return jnp.tanh(s) if activation_last else s


# ---------------------------------------------------------------------------
if __name__ == "__main__":
    B, Din, Dout, num_layers = 16, 16, 8, 2   # small example shapes

    key = jax.random.PRNGKey(0)
    k_params, k_x = jax.random.split(key)
    params = init_fc_params(k_params, Din, Dout, num_layers)
    y = jax.random.normal(k_x, (B, Din), jnp.float32)

    fwd = jax.jit(fc_forward, static_argnames=("activation_last", "tm"))

    for activation_last in (False, True):
        out = jax.block_until_ready(fwd(y, params, activation_last=activation_last))
        assert out.shape == (B, Dout) and out.dtype == jnp.float32, (out.shape, out.dtype)
        ref = _ref_fc(y, params, activation_last)
        assert jnp.allclose(out, ref, atol=2e-3, rtol=2e-3), (
            activation_last, jnp.max(jnp.abs(out - ref)))

    print("KERNEL_OK")
</pallas_src>

<mosaic_0001>
module attributes {stable_mosaic.version = 11 : i64} {
  func.func @_fc_kernel(%arg0: i32, %arg1: memref<8x128xf32, #tpu.memory_space<vmem>>, %arg2: memref<128x128xf32, #tpu.memory_space<vmem>>, %arg3: memref<1x128xf32, #tpu.memory_space<vmem>>, %arg4: memref<128x128xf32, #tpu.memory_space<vmem>>, %arg5: memref<1x128xf32, #tpu.memory_space<vmem>>, %arg6: memref<128x128xf32, #tpu.memory_space<vmem>>, %arg7: memref<1x128xf32, #tpu.memory_space<vmem>>, %arg8: memref<128x128xf32, #tpu.memory_space<vmem>>, %arg9: memref<1x128xf32, #tpu.memory_space<vmem>>, %arg10: memref<8x128xf32, #tpu.memory_space<vmem>>) attributes {dimension_semantics = [#tpu.dimension_semantics<parallel>], iteration_bounds = array<i64: 2>, scalar_prefetch = 0 : i64, scratch_operands = 0 : i64, tpu.core_type = #tpu.core_type<tc>, window_params = [{transform_indices = @transform_0, window_bounds = array<i64: 8, 128>}, {pipeline_mode = #tpu.pipeline_mode<synchronous>, transform_indices = @transform_1, window_bounds = array<i64: 128, 128>}, {pipeline_mode = #tpu.pipeline_mode<synchronous>, transform_indices = @transform_2, window_bounds = array<i64: 1, 128>}, {pipeline_mode = #tpu.pipeline_mode<synchronous>, transform_indices = @transform_3, window_bounds = array<i64: 128, 128>}, {pipeline_mode = #tpu.pipeline_mode<synchronous>, transform_indices = @transform_4, window_bounds = array<i64: 1, 128>}, {pipeline_mode = #tpu.pipeline_mode<synchronous>, transform_indices = @transform_5, window_bounds = array<i64: 128, 128>}, {pipeline_mode = #tpu.pipeline_mode<synchronous>, transform_indices = @transform_6, window_bounds = array<i64: 1, 128>}, {pipeline_mode = #tpu.pipeline_mode<synchronous>, transform_indices = @transform_7, window_bounds = array<i64: 128, 128>}, {pipeline_mode = #tpu.pipeline_mode<synchronous>, transform_indices = @transform_8, window_bounds = array<i64: 1, 128>}, {transform_indices = @transform_9, window_bounds = array<i64: 8, 128>}]} {
    %c0 = arith.constant 0 : index
    %c0_0 = arith.constant 0 : index
    %0 = vector.load %arg1[%c0, %c0_0] : memref<8x128xf32, #tpu.memory_space<vmem>>, vector<8x128xf32>
    %c0_1 = arith.constant 0 : index
    %c0_2 = arith.constant 0 : index
    %1 = vector.load %arg2[%c0_1, %c0_2] : memref<128x128xf32, #tpu.memory_space<vmem>>, vector<128x128xf32>
    %c0_3 = arith.constant 0 : index
    %c0_4 = arith.constant 0 : index
    %2 = vector.load %arg3[%c0_3, %c0_4] : memref<1x128xf32, #tpu.memory_space<vmem>>, vector<1x128xf32>
    %3 = math.tanh %0 : vector<8x128xf32>
    %cst = arith.constant dense<0.000000e+00> : vector<8x128xf32>
    %4 = tpu.matmul %3, %1, %cst {dimension_numbers = #tpu.dot_dimension_numbers<[1], [0], [0], [1], [0, 0, 1, 1], [], []>} : vector<8x128xf32>, vector<128x128xf32>, vector<8x128xf32> -> vector<8x128xf32>
    %5 = vector.broadcast %2 : vector<1x128xf32> to vector<8x128xf32>
    %6 = arith.addf %4, %5 : vector<8x128xf32>
    %c0_5 = arith.constant 0 : index
    %c0_6 = arith.constant 0 : index
    %7 = vector.load %arg4[%c0_5, %c0_6] : memref<128x128xf32, #tpu.memory_space<vmem>>, vector<128x128xf32>
    %c0_7 = arith.constant 0 : index
    %c0_8 = arith.constant 0 : index
    %8 = vector.load %arg5[%c0_7, %c0_8] : memref<1x128xf32, #tpu.memory_space<vmem>>, vector<1x128xf32>
    %9 = math.tanh %6 : vector<8x128xf32>
    %cst_9 = arith.constant dense<0.000000e+00> : vector<8x128xf32>
    %10 = tpu.matmul %9, %7, %cst_9 {dimension_numbers = #tpu.dot_dimension_numbers<[1], [0], [0], [1], [0, 0, 1, 1], [], []>} : vector<8x128xf32>, vector<128x128xf32>, vector<8x128xf32> -> vector<8x128xf32>
    %11 = vector.broadcast %8 : vector<1x128xf32> to vector<8x128xf32>
    %12 = arith.addf %10, %11 : vector<8x128xf32>
    %c0_10 = arith.constant 0 : index
    %c0_11 = arith.constant 0 : index
    %13 = vector.load %arg6[%c0_10, %c0_11] : memref<128x128xf32, #tpu.memory_space<vmem>>, vector<128x128xf32>
    %c0_12 = arith.constant 0 : index
    %c0_13 = arith.constant 0 : index
    %14 = vector.load %arg7[%c0_12, %c0_13] : memref<1x128xf32, #tpu.memory_space<vmem>>, vector<1x128xf32>
    %15 = math.tanh %12 : vector<8x128xf32>
    %cst_14 = arith.constant dense<0.000000e+00> : vector<8x128xf32>
    %16 = tpu.matmul %15, %13, %cst_14 {dimension_numbers = #tpu.dot_dimension_numbers<[1], [0], [0], [1], [0, 0, 1, 1], [], []>} : vector<8x128xf32>, vector<128x128xf32>, vector<8x128xf32> -> vector<8x128xf32>
    %17 = vector.broadcast %14 : vector<1x128xf32> to vector<8x128xf32>
    %18 = arith.addf %16, %17 : vector<8x128xf32>
    %c0_15 = arith.constant 0 : index
    %c0_16 = arith.constant 0 : index
    %19 = vector.load %arg8[%c0_15, %c0_16] : memref<128x128xf32, #tpu.memory_space<vmem>>, vector<128x128xf32>
    %c0_17 = arith.constant 0 : index
    %c0_18 = arith.constant 0 : index
    %20 = vector.load %arg9[%c0_17, %c0_18] : memref<1x128xf32, #tpu.memory_space<vmem>>, vector<1x128xf32>
    %21 = math.tanh %18 : vector<8x128xf32>
    %cst_19 = arith.constant dense<0.000000e+00> : vector<8x128xf32>
    %22 = tpu.matmul %21, %19, %cst_19 {dimension_numbers = #tpu.dot_dimension_numbers<[1], [0], [0], [1], [0, 0, 1, 1], [], []>} : vector<8x128xf32>, vector<128x128xf32>, vector<8x128xf32> -> vector<8x128xf32>
    %23 = vector.broadcast %20 : vector<1x128xf32> to vector<8x128xf32>
    %24 = arith.addf %22, %23 : vector<8x128xf32>
    %c0_20 = arith.constant 0 : index
    %c0_21 = arith.constant 0 : index
    %25 = vector.load %arg10[%c0_20, %c0_21] : memref<8x128xf32, #tpu.memory_space<vmem>>, vector<8x128xf32>
    tpu.vector_store %arg10[%c0_20, %c0_21], %24 {strides = array<i32>} : memref<8x128xf32, #tpu.memory_space<vmem>>, vector<8x128xf32>,
    return
  }
  func.func @transform_0(%arg0: i32) -> (i32, i32) {
    %c0_i32 = arith.constant 0 : i32
    %c0_i32_0 = arith.constant 0 : i32
    return %arg0, %c0_i32 : i32, i32
  }
  func.func @transform_1(%arg0: i32) -> (i32, i32) {
    %c0_i32 = arith.constant 0 : i32
    %c0_i32_0 = arith.constant 0 : i32
    %c0_i32_1 = arith.constant 0 : i32
    return %c0_i32, %c0_i32_0 : i32, i32
  }
  func.func @transform_2(%arg0: i32) -> (i32, i32) {
    %c0_i32 = arith.constant 0 : i32
    %c0_i32_0 = arith.constant 0 : i32
    %c0_i32_1 = arith.constant 0 : i32
    return %c0_i32, %c0_i32_0 : i32, i32
  }
  func.func @transform_3(%arg0: i32) -> (i32, i32) {
    %c0_i32 = arith.constant 0 : i32
    %c0_i32_0 = arith.constant 0 : i32
    %c0_i32_1 = arith.constant 0 : i32
    return %c0_i32, %c0_i32_0 : i32, i32
  }
  func.func @transform_4(%arg0: i32) -> (i32, i32) {
    %c0_i32 = arith.constant 0 : i32
    %c0_i32_0 = arith.constant 0 : i32
    %c0_i32_1 = arith.constant 0 : i32
    return %c0_i32, %c0_i32_0 : i32, i32
  }
  func.func @transform_5(%arg0: i32) -> (i32, i32) {
    %c0_i32 = arith.constant 0 : i32
    %c0_i32_0 = arith.constant 0 : i32
    %c0_i32_1 = arith.constant 0 : i32
    return %c0_i32, %c0_i32_0 : i32, i32
  }
  func.func @transform_6(%arg0: i32) -> (i32, i32) {
    %c0_i32 = arith.constant 0 : i32
    %c0_i32_0 = arith.constant 0 : i32
    %c0_i32_1 = arith.constant 0 : i32
    return %c0_i32, %c0_i32_0 : i32, i32
  }
  func.func @transform_7(%arg0: i32) -> (i32, i32) {
    %c0_i32 = arith.constant 0 : i32
    %c0_i32_0 = arith.constant 0 : i32
    %c0_i32_1 = arith.constant 0 : i32
    return %c0_i32, %c0_i32_0 : i32, i32
  }
  func.func @transform_8(%arg0: i32) -> (i32, i32) {
    %c0_i32 = arith.constant 0 : i32
    %c0_i32_0 = arith.constant 0 : i32
    %c0_i32_1 = arith.constant 0 : i32
    return %c0_i32, %c0_i32_0 : i32, i32
  }
  func.func @transform_9(%arg0: i32) -> (i32, i32) {
    %c0_i32 = arith.constant 0 : i32
    %c0_i32_0 = arith.constant 0 : i32
    return %arg0, %c0_i32 : i32, i32
  }
}

</mosaic_0001>

<llo_original>
// kernel: fc_forward.1
$region0: #{fc_forward.1}
  #allocation0 [shape = 'u32[]', space=smem, size = 0x4, offset = 0x4, fixed_abs, tag = 'smem constant byte address 0x4 - core index']
  #allocation1 [shape = 'u32[72,128]{1,0:T(1,128)}', space=vmem, size = 0x9000, scoped, tag = 'internal scratch']
  %s0 = inlined_call_operand.vmem [shape: f32[16,128], index: 0, kind: input, shape index: {}]
  %s1 = inlined_call_operand.vmem [shape: f32[128,128], index: 1, kind: input, shape index: {}]
  %s2 = inlined_call_operand.vmem [shape: f32[1,128], index: 2, kind: input, shape index: {}]
  %s3 = inlined_call_operand.vmem [shape: f32[128,128], index: 3, kind: input, shape index: {}]
  %s4 = inlined_call_operand.vmem [shape: f32[1,128], index: 4, kind: input, shape index: {}]
  %s5 = inlined_call_operand.vmem [shape: f32[128,128], index: 5, kind: input, shape index: {}]
  %s6 = inlined_call_operand.vmem [shape: f32[1,128], index: 6, kind: input, shape index: {}]
  %s7 = inlined_call_operand.vmem [shape: f32[128,128], index: 7, kind: input, shape index: {}]
  %s8 = inlined_call_operand.vmem [shape: f32[1,128], index: 8, kind: input, shape index: {}]
  %s9 = inlined_call_operand.vmem [shape: f32[16,128], index: 9, kind: output, shape index: {}]
  %s10 = sld [smem:[#allocation0]]
  $region69: #{fc_forward.1} parent=0
    _
  %s12 = ssub.s32 1, %s10
  %s13 = scalar_select 0, %s12, %s10
  loop: start=0, step=1, limit=4
  $region2: #{fc_forward.1} parent=0 // loop_pre_header
    _
  $region3: #{fc_forward.1} parent=0 // loop_header
    %s15 = sphi 0, %s19
    %p16 = scmp.ge.s32.totalorder %s15, 4
    %s25 = sphi 0, %s27
    %s28 = sphi 0, %s25
    %s29 = sphi 0, %s28
    %s45 = sphi 0, %s29
    %s49 = sphi 0, %s49
    %s51 = sphi 0, %s49
    %s52 = sphi 0, %s51
    %s66 = sphi 0, %s52
    %s70 = sphi 0, %s70
    %s72 = sphi 0, %s70
    %s73 = sphi 0, %s72
    %s87 = sphi 0, %s73
    %s91 = sphi 0, %s91
    %s93 = sphi 0, %s91
    %s94 = sphi 0, %s93
    %s108 = sphi 0, %s94
    %s112 = sphi 0, %s112
    %s114 = sphi 0, %s112
    %s115 = sphi 0, %s114
    %s129 = sphi 0, %s115
    %s133 = sphi 0, %s133
    %s135 = sphi 0, %s133
    %s136 = sphi 0, %s135
    %s150 = sphi 0, %s136
    %s154 = sphi 0, %s154
    %s156 = sphi 0, %s154
    %s157 = sphi 0, %s156
    %s171 = sphi 0, %s157
    %s175 = sphi 0, %s175
    %s177 = sphi 0, %s175
    %s178 = sphi 0, %s177
    %s192 = sphi 0, %s178
    %s196 = sphi 0, %s196
    %s198 = sphi 0, %s196
    %s199 = sphi 0, %s198
    %s213 = sphi 0, %s199
    %s219 = sphi 0, %s221
    %s222 = sphi 0, %s219
    %s223 = sphi 0, %s222
    %s239 = sphi 0, %s223
  $region4: #{fc_forward.1} parent=0 // loop_header_branch
    %18 = sbr.rel (%p16) target = $region8
  $region5: #{fc_forward.1} parent=0 // loop_body
    %s20 = ssub.s32 %s15, 1
    %s21 = ssub.s32 %s15, 2
    %s22 = sadd.s32 %s15, 1
    %s23 = ssub.s32 %s15, %s22
    %p24 = scmp.eq.s32.totalorder %s23, 0
    %s26 = sadd.s32 %s25, 1
    %s27 = scalar_select %p24, %s25, %s26
    %p30 = pneg %p24
    %p31 = scmp.eq.s32.totalorder %s15, 1
    %p32 = por %p30, %p31
    %p33 = scmp.ne.s32.totalorder %s25, %s28
    %p34 = scmp.eq.s32.totalorder %s15, 0
    %p35 = por %p33, %p34
    %p36 = scmp.ne.s32.totalorder %s25, %s28
    %p37 = scmp.eq.s32.totalorder %s20, 1
    %p38 = por %p36, %p37
    %p39 = scmp.ne.s32.totalorder %s28, %s29
    %p40 = scmp.eq.s32.totalorder %s20, 0
    %p41 = por %p39, %p40
    %p42 = scmp.ne.s32.totalorder %s28, %s29
    %p43 = scmp.eq.s32.totalorder %s21, 1
    %p44 = por %p42, %p43
    %p46 = scmp.ne.s32.totalorder %s29, %s45
    %p47 = scmp.eq.s32.totalorder %s21, 0
    %p48 = por %p46, %p47
    %s50 = sadd.s32 %s49, 1
    %p53 = scmp.eq.s32.totalorder %s15, 1
    %p54 = scmp.ne.s32.totalorder %s49, %s51
    %p55 = scmp.eq.s32.totalorder %s15, 0
    %p56 = por %p54, %p55
    %p57 = scmp.ne.s32.totalorder %s49, %s51
    %p58 = scmp.eq.s32.totalorder %s20, 1
    %p59 = por %p57, %p58
    %p60 = scmp.ne.s32.totalorder %s51, %s52
    %p61 = scmp.eq.s32.totalorder %s20, 0
    %p62 = por %p60, %p61
    %p63 = scmp.ne.s32.totalorder %s51, %s52
    %p64 = scmp.eq.s32.totalorder %s21, 1
    %p65 = por %p63, %p64
    %p67 = scmp.ne.s32.totalorder %s52, %s66
    %p68 = scmp.eq.s32.totalorder %s21, 0
    %p69 = por %p67, %p68
    %s71 = sadd.s32 %s70, 1
    %p74 = scmp.eq.s32.totalorder %s15, 1
    %p75 = scmp.ne.s32.totalorder %s70, %s72
    %p76 = scmp.eq.s32.totalorder %s15, 0
    %p77 = por %p75, %p76
    %p78 = scmp.ne.s32.totalorder %s70, %s72
    %p79 = scmp.eq.s32.totalorder %s20, 1
    %p80 = por %p78, %p79
    %p81 = scmp.ne.s32.totalorder %s72, %s73
    %p82 = scmp.eq.s32.totalorder %s20, 0
    %p83 = por %p81, %p82
    %p84 = scmp.ne.s32.totalorder %s72, %s73
    %p85 = scmp.eq.s32.totalorder %s21, 1
    %p86 = por %p84, %p85
    %p88 = scmp.ne.s32.totalorder %s73, %s87
    %p89 = scmp.eq.s32.totalorder %s21, 0
    %p90 = por %p88, %p89
    %s92 = sadd.s32 %s91, 1
    %p95 = scmp.eq.s32.totalorder %s15, 1
    %p96 = scmp.ne.s32.totalorder %s91, %s93
    %p97 = scmp.eq.s32.totalorder %s15, 0
    %p98 = por %p96, %p97
    %p99 = scmp.ne.s32.totalorder %s91, %s93
    %p100 = scmp.eq.s32.totalorder %s20, 1
    %p101 = por %p99, %p100
    %p102 = scmp.ne.s32.totalorder %s93, %s94
    %p103 = scmp.eq.s32.totalorder %s20, 0
    %p104 = por %p102, %p103
    %p105 = scmp.ne.s32.totalorder %s93, %s94
    %p106 = scmp.eq.s32.totalorder %s21, 1
    %p107 = por %p105, %p106
    %p109 = scmp.ne.s32.totalorder %s94, %s108
    %p110 = scmp.eq.s32.totalorder %s21, 0
    %p111 = por %p109, %p110
    %s113 = sadd.s32 %s112, 1
    %p116 = scmp.eq.s32.totalorder %s15, 1
    %p117 = scmp.ne.s32.totalorder %s112, %s114
    %p118 = scmp.eq.s32.totalorder %s15, 0
    %p119 = por %p117, %p118
    %p120 = scmp.ne.s32.totalorder %s112, %s114
    %p121 = scmp.eq.s32.totalorder %s20, 1
    %p122 = por %p120, %p121
    %p123 = scmp.ne.s32.totalorder %s114, %s115
    %p124 = scmp.eq.s32.totalorder %s20, 0
    %p125 = por %p123, %p124
    %p126 = scmp.ne.s32.totalorder %s114, %s115
    %p127 = scmp.eq.s32.totalorder %s21, 1
    %p128 = por %p126, %p127
    %p130 = scmp.ne.s32.totalorder %s115, %s129
    %p131 = scmp.eq.s32.totalorder %s21, 0
    %p132 = por %p130, %p131
    %s134 = sadd.s32 %s133, 1
    %p137 = scmp.eq.s32.totalorder %s15, 1
    %p138 = scmp.ne.s32.totalorder %s133, %s135
    %p139 = scmp.eq.s32.totalorder %s15, 0
    %p140 = por %p138, %p139
    %p141 = scmp.ne.s32.totalorder %s133, %s135
    %p142 = scmp.eq.s32.totalorder %s20, 1
    %p143 = por %p141, %p142
    %p144 = scmp.ne.s32.totalorder %s135, %s136
    %p145 = scmp.eq.s32.totalorder %s20, 0
    %p146 = por %p144, %p145
    %p147 = scmp.ne.s32.totalorder %s135, %s136
    %p148 = scmp.eq.s32.totalorder %s21, 1
    %p149 = por %p147, %p148
    %p151 = scmp.ne.s32.totalorder %s136, %s150
    %p152 = scmp.eq.s32.totalorder %s21, 0
    %p153 = por %p151, %p152
    %s155 = sadd.s32 %s154, 1
    %p158 = scmp.eq.s32.totalorder %s15, 1
    %p159 = scmp.ne.s32.totalorder %s154, %s156
    %p160 = scmp.eq.s32.totalorder %s15, 0
    %p161 = por %p159, %p160
    %p162 = scmp.ne.s32.totalorder %s154, %s156
    %p163 = scmp.eq.s32.totalorder %s20, 1
    %p164 = por %p162, %p163
    %p165 = scmp.ne.s32.totalorder %s156, %s157
    %p166 = scmp.eq.s32.totalorder %s20, 0
    %p167 = por %p165, %p166
    %p168 = scmp.ne.s32.totalorder %s156, %s157
    %p169 = scmp.eq.s32.totalorder %s21, 1
    %p170 = por %p168, %p169
    %p172 = scmp.ne.s32.totalorder %s157, %s171
    %p173 = scmp.eq.s32.totalorder %s21, 0
    %p174 = por %p172, %p173
    %s176 = sadd.s32 %s175, 1
    %p179 = scmp.eq.s32.totalorder %s15, 1
    %p180 = scmp.ne.s32.totalorder %s175, %s177
    %p181 = scmp.eq.s32.totalorder %s15, 0
    %p182 = por %p180, %p181
    %p183 = scmp.ne.s32.totalorder %s175, %s177
    %p184 = scmp.eq.s32.totalorder %s20, 1
    %p185 = por %p183, %p184
    %p186 = scmp.ne.s32.totalorder %s177, %s178
    %p187 = scmp.eq.s32.totalorder %s20, 0
    %p188 = por %p186, %p187
    %p189 = scmp.ne.s32.totalorder %s177, %s178
    %p190 = scmp.eq.s32.totalorder %s21, 1
    %p191 = por %p189, %p190
    %p193 = scmp.ne.s32.totalorder %s178, %s192
    %p194 = scmp.eq.s32.totalorder %s21, 0
    %p195 = por %p193, %p194
    %s197 = sadd.s32 %s196, 1
    %p200 = scmp.eq.s32.totalorder %s15, 1
    %p201 = scmp.ne.s32.totalorder %s196, %s198
    %p202 = scmp.eq.s32.totalorder %s15, 0
    %p203 = por %p201, %p202
    %p204 = scmp.ne.s32.totalorder %s196, %s198
    %p205 = scmp.eq.s32.totalorder %s20, 1
    %p206 = por %p204, %p205
    %p207 = scmp.ne.s32.totalorder %s198, %s199
    %p208 = scmp.eq.s32.totalorder %s20, 0
    %p209 = por %p207, %p208
    %p210 = scmp.ne.s32.totalorder %s198, %s199
    %p211 = scmp.eq.s32.totalorder %s21, 1
    %p212 = por %p210, %p211
    %p214 = scmp.ne.s32.totalorder %s199, %s213
    %p215 = scmp.eq.s32.totalorder %s21, 0
    %p216 = por %p214, %p215
    %s217 = ssub.s32 %s15, %s22
    %p218 = scmp.eq.s32.totalorder %s217, 0
    %s220 = sadd.s32 %s219, 1
    %s221 = scalar_select %p218, %s219, %s220
    %p224 = pneg %p218
    %p225 = scmp.eq.s32.totalorder %s15, 1
    %p226 = por %p224, %p225
    %p227 = scmp.ne.s32.totalorder %s219, %s222
    %p228 = scmp.eq.s32.totalorder %s15, 0
    %p229 = por %p227, %p228
    %p230 = scmp.ne.s32.totalorder %s219, %s222
    %p231 = scmp.eq.s32.totalorder %s20, 1
    %p232 = por %p230, %p231
    %p233 = scmp.ne.s32.totalorder %s222, %s223
    %p234 = scmp.eq.s32.totalorder %s20, 0
    %p235 = por %p233, %p234
    %p236 = scmp.ne.s32.totalorder %s222, %s223
    %p237 = scmp.eq.s32.totalorder %s21, 1
    %p238 = por %p236, %p237
    %p240 = scmp.ne.s32.totalorder %s223, %s239
    %p241 = scmp.eq.s32.totalorder %s21, 0
    %p242 = por %p240, %p241
    %p243 = scmp.le.s32.totalorder 1, %s15
    %p244 = scmp.lt.s32.totalorder %s15, 3
    %p245 = pnand %p243, %p244
    %p246 = pneg %p245
    // Predicated region
    $region9: #{fc_forward.1} parent=5 // pred_check
      _
    $region10: #{fc_forward.1} parent=5 // pred_check_branch
      %248 = sbr.rel (%p245) target = $region12
    $region11: #{fc_forward.1} parent=5 // pred_region
      %s249 = ssub.s32 %s15, 1
      // Predicated region
      $region13: #{fc_forward.1} parent=11 // pred_check
        %p250 = pneg %p62
      $region14: #{fc_forward.1} parent=11 // pred_check_branch
        %252 = sbr.rel (%p250) target = $region16
      $region15: #{fc_forward.1} parent=11 // pred_region
        _
      $region16: #{fc_forward.1} parent=11 // pred_fallthru
        _
      // Predicated region
      $region17: #{fc_forward.1} parent=11 // pred_check
        %p253 = pneg %p83
      $region18: #{fc_forward.1} parent=11 // pred_check_branch
        %255 = sbr.rel (%p253) target = $region20
      $region19: #{fc_forward.1} parent=11 // pred_region
        _
      $region20: #{fc_forward.1} parent=11 // pred_fallthru
        _
      // Predicated region
      $region21: #{fc_forward.1} parent=11 // pred_check
        %p256 = pneg %p104
      $region22: #{fc_forward.1} parent=11 // pred_check_branch
        %258 = sbr.rel (%p256) target = $region24
      $region23: #{fc_forward.1} parent=11 // pred_region
        _
      $region24: #{fc_forward.1} parent=11 // pred_fallthru
        _
      // Predicated region
      $region25: #{fc_forward.1} parent=11 // pred_check
        %p259 = pneg %p125
      $region26: #{fc_forward.1} parent=11 // pred_check_branch
        %261 = sbr.rel (%p259) target = $region28
      $region27: #{fc_forward.1} parent=11 // pred_region
        _
      $region28: #{fc_forward.1} parent=11 // pred_fallthru
        _
      // Predicated region
      $region29: #{fc_forward.1} parent=11 // pred_check
        %p262 = pneg %p146
      $region30: #{fc_forward.1} parent=11 // pred_check_branch
        %264 = sbr.rel (%p262) target = $region32
      $region31: #{fc_forward.1} parent=11 // pred_region
        _
      $region32: #{fc_forward.1} parent=11 // pred_fallthru
        _
      // Predicated region
      $region33: #{fc_forward.1} parent=11 // pred_check
        %p265 = pneg %p167
      $region34: #{fc_forward.1} parent=11 // pred_check_branch
        %267 = sbr.rel (%p265) target = $region36
      $region35: #{fc_forward.1} parent=11 // pred_region
        _
      $region36: #{fc_forward.1} parent=11 // pred_fallthru
        _
      // Predicated region
      $region37: #{fc_forward.1} parent=11 // pred_check
        %p268 = pneg %p188
      $region38: #{fc_forward.1} parent=11 // pred_check_branch
        %270 = sbr.rel (%p268) target = $region40
      $region39: #{fc_forward.1} parent=11 // pred_region
        _
      $region40: #{fc_forward.1} parent=11 // pred_fallthru
        _
      // Predicated region
      $region41: #{fc_forward.1} parent=11 // pred_check
        %p271 = pneg %p209
      $region42: #{fc_forward.1} parent=11 // pred_check_branch
        %273 = sbr.rel (%p271) target = $region44
      $region43: #{fc_forward.1} parent=11 // pred_region
        _
      $region44: #{fc_forward.1} parent=11 // pred_fallthru
        _
    $region12: #{fc_forward.1} parent=5 // pred_fallthru
      _
    %p274 = scmp.lt.s32.totalorder %s15, 2
    // Predicated region
    $region45: #{fc_forward.1} parent=5 // pred_check
      %p275 = pneg %p274
    $region46: #{fc_forward.1} parent=5 // pred_check_branch
      %277 = sbr.rel (%p275) target = $region48
    $region47: #{fc_forward.1} parent=5 // pred_region
      // Predicated region
      $region49: #{fc_forward.1} parent=47 // pred_check
        %p278 = pneg %p35
      $region50: #{fc_forward.1} parent=47 // pred_check_branch
        %280 = sbr.rel (%p278) target = $region52
      $region51: #{fc_forward.1} parent=47 // pred_region
        %p281 = scmp.lt.s32.totalorder %s15, 1
        %s282 = scalar_select %p281, %s15, 1
        %s283 = smul.addr %s282, 8
        %s284 = scalar_lea.vmem %s0, %s283
      $region52: #{fc_forward.1} parent=47 // pred_fallthru
        _
    $region48: #{fc_forward.1} parent=5 // pred_fallthru
      _
    %p285 = scmp.le.s32.totalorder 1, %s15
    %p286 = scmp.lt.s32.totalorder %s15, 3
    %p287 = pnand %p285, %p286
    %p288 = pneg %p287
    // Predicated region
    $region53: #{fc_forward.1} parent=5 // pred_check
      _
    $region54: #{fc_forward.1} parent=5 // pred_check_branch
      %290 = sbr.rel (%p287) target = $region56
    $region55: #{fc_forward.1} parent=5 // pred_region
      %s291 = ssub.s32 %s15, 1
      %p292 = scmp.lt.s32.totalorder %s20, 1
      %s293 = scalar_select %p292, %s20, 1
      %s294 = smul.addr %s293, 8
      %s295 = scalar_lea.vmem %s0, %s294
      %p296 = pneg %p41
      %p297 = pneg %p38
      %p298 = pneg %p62
      %p299 = pneg %p59
      %p300 = pneg %p83
      %p301 = pneg %p80
      %p302 = pneg %p104
      %p303 = pneg %p101
      %p304 = pneg %p125
      %p305 = pneg %p122
      %p306 = pneg %p146
      %p307 = pneg %p143
      %p308 = pneg %p167
      %p309 = pneg %p164
      %p310 = pneg %p188
      %p311 = pneg %p185
      %p312 = pneg %p209
      %p313 = pneg %p206
      %p314 = pneg %p235
      %p315 = pneg %p232
      %p316 = scmp.lt.s32.totalorder %s20, 1
      %s317 = scalar_select %p316, %s20, 1
      %s318 = smul.addr %s317, 8
      %s319 = scalar_lea.vmem %s9, %s318
      %p320 = scmp.lt.s32.totalorder %s20, 1
      %s321 = scalar_select %p320, %s20, 1
      %s322 = smul.addr %s321, 8
      %s323 = scalar_lea.vmem %s0, %s322
      %p324 = scmp.lt.s32.totalorder %s20, 1
      %s325 = scalar_select %p324, %s20, 1
      %s326 = smul.addr %s325, 8
      %s327 = scalar_lea.vmem %s9, %s326
      %v328 = vld [vmem:[%s323] sm:$0xff]
      %v329 = vld [vmem:[%s1] sm:$0xff]
      %v330 = vld [vmem:[%s1 + $0x8] sm:$0xff]
      %v331 = vld [vmem:[%s1 + $0x10] sm:$0xff]
      %v332 = vld [vmem:[%s1 + $0x18] sm:$0xff]
      %v333 = vld [vmem:[%s1 + $0x20] sm:$0xff]
      %v334 = vld [vmem:[%s1 + $0x28] sm:$0xff]
      %v335 = vld [vmem:[%s1 + $0x30] sm:$0xff]
      %v336 = vld [vmem:[%s1 + $0x38] sm:$0xff]
      %v337 = vld [vmem:[%s1 + $0x40] sm:$0xff]
      %v338 = vld [vmem:[%s1 + $0x48] sm:$0xff]
      %v339 = vld [vmem:[%s1 + $0x50] sm:$0xff]
      %v340 = vld [vmem:[%s1 + $0x58] sm:$0xff]
      %v341 = vld [vmem:[%s1 + $0x60] sm:$0xff]
      %v342 = vld [vmem:[%s1 + $0x68] sm:$0xff]
      %v343 = vld [vmem:[%s1 + $0x70] sm:$0xff]
      %v344 = vld [vmem:[%s1 + $0x78] sm:$0xff]
      %v345 = vld [vmem:[%s2] sm:$0x1]
      %v346 = vtanh.pop %v328
      %v348 = vperm.slane %v345, 0
      %350 = vmatpush.msra.mxu0 %v344
      %351 = vmatpush.msra.mxu0 %v343
      %352 = vmatpush.msra.mxu0 %v342
      %353 = vmatpush.msra.mxu0 %v341
      %354 = vmatpush.msra.mxu0 %v340
      %355 = vmatpush.msra.mxu0 %v339
      %356 = vmatpush.msra.mxu0 %v338
      %357 = vmatpush.msra.mxu0 %v337
      %358 = vmatpush.msra.mxu0 %v336
      %359 = vmatpush.msra.mxu0 %v335
      %360 = vmatpush.msra.mxu0 %v334
      %361 = vmatpush.msra.mxu0 %v333
      %362 = vmatpush.msra.mxu0 %v332
      %363 = vmatpush.msra.mxu0 %v331
      %364 = vmatpush.msra.mxu0 %v330
      %365 = vmatpush.msra.mxu0 %v329
      %366 = vmatmul.f32.gmra.mxu0 %v346
      %v367 = vpop.f32.mrf.mxu0
      %v368 = vadd.f32 %v348, %v367
      %369 = vdwg.mxu0
      %v370 = vld [vmem:[%s3] sm:$0xff]
      %v371 = vld [vmem:[%s3 + $0x8] sm:$0xff]
      %v372 = vld [vmem:[%s3 + $0x10] sm:$0xff]
      %v373 = vld [vmem:[%s3 + $0x18] sm:$0xff]
      %v374 = vld [vmem:[%s3 + $0x20] sm:$0xff]
      %v375 = vld [vmem:[%s3 + $0x28] sm:$0xff]
      %v376 = vld [vmem:[%s3 + $0x30] sm:$0xff]
      %v377 = vld [vmem:[%s3 + $0x38] sm:$0xff]
      %v378 = vld [vmem:[%s3 + $0x40] sm:$0xff]
      %v379 = vld [vmem:[%s3 + $0x48] sm:$0xff]
      %v380 = vld [vmem:[%s3 + $0x50] sm:$0xff]
      %v381 = vld [vmem:[%s3 + $0x58] sm:$0xff]
      %v382 = vld [vmem:[%s3 + $0x60] sm:$0xff]
      %v383 = vld [vmem:[%s3 + $0x68] sm:$0xff]
      %v384 = vld [vmem:[%s3 + $0x70] sm:$0xff]
      %v385 = vld [vmem:[%s3 + $0x78] sm:$0xff]
      %v386 = vld [vmem:[%s4] sm:$0x1]
      %v387 = vtanh.pop %v368
      %v389 = vperm.slane %v386, 0
      %391 = vmatpush.msra.mxu0 %v385
      %392 = vmatpush.msra.mxu0 %v384
      %393 = vmatpush.msra.mxu0 %v383
      %394 = vmatpush.msra.mxu0 %v382
      %395 = vmatpush.msra.mxu0 %v381
      %396 = vmatpush.msra.mxu0 %v380
      %397 = vmatpush.msra.mxu0 %v379
      %398 = vmatpush.msra.mxu0 %v378
      %399 = vmatpush.msra.mxu0 %v377
      %400 = vmatpush.msra.mxu0 %v376
      %401 = vmatpush.msra.mxu0 %v375
      %402 = vmatpush.msra.mxu0 %v374
      %403 = vmatpush.msra.mxu0 %v373
      %404 = vmatpush.msra.mxu0 %v372
      %405 = vmatpush.msra.mxu0 %v371
      %406 = vmatpush.msra.mxu0 %v370
      %407 = vmatmul.f32.gmra.mxu0 %v387
      %v408 = vpop.f32.mrf.mxu0
      %v409 = vadd.f32 %v389, %v408
      %410 = vdwg.mxu0
      %v411 = vld [vmem:[%s5] sm:$0xff]
      %v412 = vld [vmem:[%s5 + $0x8] sm:$0xff]
      %v413 = vld [vmem:[%s5 + $0x10] sm:$0xff]
      %v414 = vld [vmem:[%s5 + $0x18] sm:$0xff]
      %v415 = vld [vmem:[%s5 + $0x20] sm:$0xff]
      %v416 = vld [vmem:[%s5 + $0x28] sm:$0xff]
      %v417 = vld [vmem:[%s5 + $0x30] sm:$0xff]
      %v418 = vld [vmem:[%s5 + $0x38] sm:$0xff]
      %v419 = vld [vmem:[%s5 + $0x40] sm:$0xff]
      %v420 = vld [vmem:[%s5 + $0x48] sm:$0xff]
      %v421 = vld [vmem:[%s5 + $0x50] sm:$0xff]
      %v422 = vld [vmem:[%s5 + $0x58] sm:$0xff]
      %v423 = vld [vmem:[%s5 + $0x60] sm:$0xff]
      %v424 = vld [vmem:[%s5 + $0x68] sm:$0xff]
      %v425 = vld [vmem:[%s5 + $0x70] sm:$0xff]
      %v426 = vld [vmem:[%s5 + $0x78] sm:$0xff]
      %v427 = vld [vmem:[%s6] sm:$0x1]
      %v428 = vtanh.pop %v409
      %v430 = vperm.slane %v427, 0
      %432 = vmatpush.msra.mxu0 %v426
      %433 = vmatpush.msra.mxu0 %v425
      %434 = vmatpush.msra.mxu0 %v424
      %435 = vmatpush.msra.mxu0 %v423
      %436 = vmatpush.msra.mxu0 %v422
      %437 = vmatpush.msra.mxu0 %v421
      %438 = vmatpush.msra.mxu0 %v420
      %439 = vmatpush.msra.mxu0 %v419
      %440 = vmatpush.msra.mxu0 %v418
      %441 = vmatpush.msra.mxu0 %v417
      %442 = vmatpush.msra.mxu0 %v416
      %443 = vmatpush.msra.mxu0 %v415
      %444 = vmatpush.msra.mxu0 %v414
      %445 = vmatpush.msra.mxu0 %v413
      %446 = vmatpush.msra.mxu0 %v412
      %447 = vmatpush.msra.mxu0 %v411
      %448 = vmatmul.f32.gmra.mxu0 %v428
      %v449 = vpop.f32.mrf.mxu0
      %v450 = vadd.f32 %v430, %v449
      %451 = vdwg.mxu0
      %v452 = vld [vmem:[%s7] sm:$0xff]
      %v453 = vld [vmem:[%s7 + $0x8] sm:$0xff]
      %v454 = vld [vmem:[%s7 + $0x10] sm:$0xff]
      %v455 = vld [vmem:[%s7 + $0x18] sm:$0xff]
      %v456 = vld [vmem:[%s7 + $0x20] sm:$0xff]
      %v457 = vld [vmem:[%s7 + $0x28] sm:$0xff]
      %v458 = vld [vmem:[%s7 + $0x30] sm:$0xff]
      %v459 = vld [vmem:[%s7 + $0x38] sm:$0xff]
      %v460 = vld [vmem:[%s7 + $0x40] sm:$0xff]
      %v461 = vld [vmem:[%s7 + $0x48] sm:$0xff]
      %v462 = vld [vmem:[%s7 + $0x50] sm:$0xff]
      %v463 = vld [vmem:[%s7 + $0x58] sm:$0xff]
      %v464 = vld [vmem:[%s7 + $0x60] sm:$0xff]
      %v465 = vld [vmem:[%s7 + $0x68] sm:$0xff]
      %v466 = vld [vmem:[%s7 + $0x70] sm:$0xff]
      %v467 = vld [vmem:[%s7 + $0x78] sm:$0xff]
      %v468 = vld [vmem:[%s8] sm:$0x1]
      %v469 = vtanh.pop %v450
      %v471 = vperm.slane %v468, 0
      %473 = vmatpush.msra.mxu0 %v467
      %474 = vmatpush.msra.mxu0 %v466
      %475 = vmatpush.msra.mxu0 %v465
      %476 = vmatpush.msra.mxu0 %v464
      %477 = vmatpush.msra.mxu0 %v463
      %478 = vmatpush.msra.mxu0 %v462
      %479 = vmatpush.msra.mxu0 %v461
      %480 = vmatpush.msra.mxu0 %v460
      %481 = vmatpush.msra.mxu0 %v459
      %482 = vmatpush.msra.mxu0 %v458
      %483 = vmatpush.msra.mxu0 %v457
      %484 = vmatpush.msra.mxu0 %v456
      %485 = vmatpush.msra.mxu0 %v455
      %486 = vmatpush.msra.mxu0 %v454
      %487 = vmatpush.msra.mxu0 %v453
      %488 = vmatpush.msra.mxu0 %v452
      %489 = vmatmul.f32.gmra.mxu0 %v469
      %v490 = vpop.f32.mrf.mxu0
      %v491 = vadd.f32 %v471, %v490
      %492 = vdwg.mxu0
      %493 = vst [vmem:[%s327] sm:$0xff] %v491
      %p494 = scmp.lt.s32.totalorder %s20, 1
      %s495 = scalar_select %p494, %s20, 1
      %s496 = smul.addr %s495, 8
      %s497 = scalar_lea.vmem %s9, %s496
      // Predicated region
      $region57: #{fc_forward.1} parent=55 // pred_check
        %p498 = pneg %p232
      $region58: #{fc_forward.1} parent=55 // pred_check_branch
        %500 = sbr.rel (%p498) target = $region60
      $region59: #{fc_forward.1} parent=55 // pred_region
        _
      $region60: #{fc_forward.1} parent=55 // pred_fallthru
        _
    $region56: #{fc_forward.1} parent=5 // pred_fallthru
      _
    %p501 = scmp.le.s32.totalorder 2, %s15
    // Predicated region
    $region61: #{fc_forward.1} parent=5 // pred_check
      %p502 = pneg %p501
    $region62: #{fc_forward.1} parent=5 // pred_check_branch
      %504 = sbr.rel (%p502) target = $region64
    $region63: #{fc_forward.1} parent=5 // pred_region
      %s505 = ssub.s32 %s15, 2
      // Predicated region
      $region65: #{fc_forward.1} parent=63 // pred_check
        %p506 = pneg %p238
      $region66: #{fc_forward.1} parent=63 // pred_check_branch
        %508 = sbr.rel (%p506) target = $region68
      $region67: #{fc_forward.1} parent=63 // pred_region
        %p509 = scmp.lt.s32.totalorder %s21, 1
        %s510 = scalar_select %p509, %s21, 1
        %s511 = smul.addr %s510, 8
        %s512 = scalar_lea.vmem %s9, %s511
      $region68: #{fc_forward.1} parent=63 // pred_fallthru
        _
    $region64: #{fc_forward.1} parent=5 // pred_fallthru
      _
  $region6: #{fc_forward.1} parent=0 // loop_footer
    %s19 = sadd.s32 1, %s15
  $region7: #{fc_forward.1} parent=0 // loop_footer_branch
    %14 = sbr.rel target = $region3
  $region8: #{fc_forward.1} parent=0 // loop_exit
    _

</llo_original>
